<compile_context>
chip_gen: v6e
topology: v6e:2x2x1
jax: 0.10.0
libtpu: 0.0.40
codegen_flags: <defaults>
</compile_context>

<pallas_src>
import jax
import jax.numpy as jnp
from jax.experimental import pallas as pl
from jax.experimental.pallas import tpu as pltpu


def _dsconv_kernel(x_ref, xl_ref, xr_ref, wf_ref, bf_ref, o_ref):
    """One (batch, L-tile) block of the fused depthwise-separable conv.

    x_ref : (1, LT, C_in)      main rows of x for this tile
    xl_ref: (1, 8, C_in)       8 rows just before the tile (clamped at i == 0)
    xr_ref: (1, 8, C_in)       8 rows just after the tile (clamped at last tile)
    wf_ref: (k, C_in, C_out)   fused depthwise*pointwise weights (bf16)
    bf_ref: (1, C_out)         fused bias (f32)
    o_ref : (1, LT, C_out)
    """
    k = wf_ref.shape[0]
    pad = (k - 1) // 2
    LT = o_ref.shape[1]
    C_out = o_ref.shape[2]

    i = pl.program_id(1)
    n_l = pl.num_programs(1)

    main = x_ref[0, :, :]
    if pad > 0:
        # Halo rows; zeroed (via scalar masks) at the first / last tile so the
        # semantics match Conv1d zero padding without ever padding x in HBM.
        lmask = (i > 0).astype(main.dtype)
        rmask = (i < n_l - 1).astype(main.dtype)
        left = xl_ref[0, 8 - pad:, :] * lmask
        right = xr_ref[0, :pad, :] * rmask
        window = jnp.concatenate([left, main, right], axis=0)   # (LT + 2*pad, C_in)
    else:
        window = main
    window = window.astype(jnp.bfloat16)

    # k shifted matmuls on the MXU, accumulated in f32.
    acc = jnp.zeros((LT, C_out), jnp.float32)
    for t in range(k):                      # k is small & static -> unrolled
        acc = acc + jnp.dot(window[t:t + LT, :], wf_ref[t],
                            preferred_element_type=jnp.float32)
    y = acc + bf_ref[...]
    o_ref[0, :, :] = jnp.maximum(y, 0.0).astype(o_ref.dtype)


def _pick_l_tile(L, target):
    """Largest multiple of 8 that divides L and is <= target."""
    best = None
    for t in range(8, min(L, target) + 1, 8):
        if L % t == 0:
            best = t
    return best


def depthwise_separable_conv1d(x, w_depth, b_depth, w_point, b_point,
                               kernel_size, *, l_tile=256):
    """x: (B, L, C_in).  w_depth: (C_in, 1, k), b_depth: (C_in,),
    w_point: (C_out, C_in, 1), b_point: (C_out,)   (PyTorch Conv1d shapes).

    Returns relu(pointwise(depthwise(x))), shape (B, L, C_out).
    For lane-dense stores, C_out should ideally be a multiple of 128.
    """
    B, L, C_in = x.shape
    C_out = w_point.shape[0]
    k = int(kernel_size)
    # TODO(synk): even kernel_size (L_out = L + 1, asymmetric halo) is not
    # handled by the tiled halo path; QANet uses odd k (5 / 7).
    assert k % 2 == 1, "kernel_size must be odd"
    pad = k // 2
    assert pad <= 8, "kernel_size must be <= 17 (halo fits one 8-row block)"

    LT = _pick_l_tile(L, l_tile)
    assert LT is not None, "sequence length must be a multiple of 8"
    n_l = L // LT
    m = LT // 8          # L-tile size measured in 8-row blocks
    n8 = L // 8          # number of 8-row blocks along L

    # Fold depthwise taps into the pointwise matmul (tiny wrapper-side work):
    #   W_t = diag(w_dw[:, t]) @ W_pw ,   b = b_dw @ W_pw + b_pw
    wdw = jnp.transpose(w_depth[:, 0, :], (1, 0)).astype(jnp.float32)   # (k, C_in)
    wpw = jnp.transpose(w_point[:, :, 0], (1, 0)).astype(jnp.float32)   # (C_in, C_out)
    w_fused = (wdw[:, :, None] * wpw[None, :, :]).astype(jnp.bfloat16)  # (k, C_in, C_out)
    b_fused = (b_depth.astype(jnp.float32) @ wpw
               + b_point.astype(jnp.float32)).reshape(1, C_out)

    out = pl.pallas_call(
        _dsconv_kernel,
        out_shape=jax.ShapeDtypeStruct((B, L, C_out), x.dtype),
        grid_spec=pltpu.PrefetchScalarGridSpec(
            num_scalar_prefetch=0,
            grid=(B, n_l),
            in_specs=[
                # main tile rows
                pl.BlockSpec((1, LT, C_in), lambda b, i: (b, i, 0)),
                # 8-row block just before the tile (clamped to block 0)
                pl.BlockSpec((1, 8, C_in),
                             lambda b, i: (b, jnp.maximum(i * m - 1, 0), 0)),
                # 8-row block just after the tile (clamped to the last block)
                pl.BlockSpec((1, 8, C_in),
                             lambda b, i: (b, jnp.minimum((i + 1) * m, n8 - 1), 0)),
                # fused weights / bias: same block every step (stay resident)
                pl.BlockSpec((k, C_in, C_out), lambda b, i: (0, 0, 0)),
                pl.BlockSpec((1, C_out), lambda b, i: (0, 0)),
            ],
            out_specs=pl.BlockSpec((1, LT, C_out), lambda b, i: (b, i, 0)),
        ),
        compiler_params=pltpu.CompilerParams(
            dimension_semantics=("parallel", "parallel"),
            # Blocks are small by construction; explicit cap is safe even on
            # v7x's 64 MiB VMEM.
            vmem_limit_bytes=32 * 1024 * 1024,
        ),
    )(x, x, x, w_fused, b_fused)
    return out


def _reference(x, w_depth, b_depth, w_point, b_point, k):
    """Pure-JAX f32 reference mirroring the PyTorch module."""
    B, L, C_in = x.shape
    pad = k // 2
    xp = jnp.pad(x, ((0, 0), (pad, pad), (0, 0)))
    L_out = L + 2 * pad - k + 1
    wdw = jnp.transpose(w_depth[:, 0, :], (1, 0))  # (k, C_in)
    dw = jnp.zeros((B, L_out, C_in), jnp.float32)
    for t in range(k):
        dw = dw + xp[:, t:t + L_out, :] * wdw[t][None, None, :]
    dw = dw + b_depth[None, None, :]
    pw = jnp.einsum("blc,oc->blo", dw, w_point[:, :, 0]) + b_point[None, None, :]
    return jnp.maximum(pw, 0.0)


if __name__ == "__main__":
    key = jax.random.PRNGKey(0)
    # Small but lane-friendly shapes: C_in = C_out = 128 (lane-dense loads and
    # stores); L = 96 with l_tile=32 -> 3 L-tiles per batch element, which
    # exercises the first / middle / last boundary-halo masking.
    B, L, C_in, C_out, K = 2, 96, 128, 128, 5

    k1, k2, k3, k4, k5 = jax.random.split(key, 5)
    x = jax.random.normal(k1, (B, L, C_in), dtype=jnp.float32)
    # Parameter shapes match nn.Conv1d: depthwise (C_in, 1, K), pointwise (C_out, C_in, 1)
    w_depth = 0.2 * jax.random.normal(k2, (C_in, 1, K), dtype=jnp.float32)
    b_depth = 0.1 * jax.random.normal(k3, (C_in,), dtype=jnp.float32)
    w_point = 0.2 * jax.random.normal(k4, (C_out, C_in, 1), dtype=jnp.float32)
    b_point = 0.1 * jax.random.normal(k5, (C_out,), dtype=jnp.float32)

    y = depthwise_separable_conv1d(x, w_depth, b_depth, w_point, b_point, K,
                                   l_tile=32)
    y = jax.block_until_ready(y)

    y_ref = _reference(x, w_depth, b_depth, w_point, b_point, K)
    assert y.shape == (B, L, C_out), y.shape
    # bf16 MXU operands with f32 accumulation -> allow ~1e-2-scale deviation.
    max_err = float(jnp.max(jnp.abs(y - y_ref)))
    assert jnp.allclose(y, y_ref, atol=5e-2, rtol=5e-2), max_err

    print("KERNEL_OK")
</pallas_src>

<mosaic_0001>
module attributes {stable_mosaic.version = 11 : i64} {
  func.func @_dsconv_kernel(%arg0: i32, %arg1: i32, %arg2: memref<1x32x128xf32, #tpu.memory_space<vmem>>, %arg3: memref<1x8x128xf32, #tpu.memory_space<vmem>>, %arg4: memref<1x8x128xf32, #tpu.memory_space<vmem>>, %arg5: memref<5x128x128xbf16, #tpu.memory_space<vmem>>, %arg6: memref<1x128xf32, #tpu.memory_space<vmem>>, %arg7: memref<1x32x128xf32, #tpu.memory_space<vmem>>) attributes {dimension_semantics = [#tpu.dimension_semantics<parallel>, #tpu.dimension_semantics<parallel>], iteration_bounds = array<i64: 2, 3>, scalar_prefetch = 0 : i64, scratch_operands = 0 : i64, tpu.core_type = #tpu.core_type<tc>, window_params = [{transform_indices = @transform_0, window_bounds = array<i64: 1, 32, 128>}, {transform_indices = @transform_1, window_bounds = array<i64: 1, 8, 128>}, {transform_indices = @transform_2, window_bounds = array<i64: 1, 8, 128>}, {pipeline_mode = #tpu.pipeline_mode<synchronous>, transform_indices = @transform_3, window_bounds = array<i64: 5, 128, 128>}, {pipeline_mode = #tpu.pipeline_mode<synchronous>, transform_indices = @transform_4, window_bounds = array<i64: 1, 128>}, {transform_indices = @transform_5, window_bounds = array<i64: 1, 32, 128>}]} {
    %c0 = arith.constant 0 : index
    %c0_0 = arith.constant 0 : index
    %c0_1 = arith.constant 0 : index
    %0 = vector.load %arg2[%c0, %c0_0, %c0_1] : memref<1x32x128xf32, #tpu.memory_space<vmem>>, vector<1x32x128xf32>
    %1 = vector.shape_cast %0 : vector<1x32x128xf32> to vector<32x128xf32>
    %c0_i32 = arith.constant 0 : i32
    %2 = arith.cmpi sgt, %arg1, %c0_i32 : i32
    %3 = arith.extui %2 : i1 to i32
    %4 = arith.sitofp %3 : i32 to f32
    %c2_i32 = arith.constant 2 : i32
    %5 = arith.cmpi slt, %arg1, %c2_i32 : i32
    %6 = arith.extui %5 : i1 to i32
    %7 = arith.sitofp %6 : i32 to f32
    %c0_2 = arith.constant 0 : index
    %c6 = arith.constant 6 : index
    %c0_3 = arith.constant 0 : index
    %8 = vector.load %arg3[%c0_2, %c6, %c0_3] : memref<1x8x128xf32, #tpu.memory_space<vmem>>, vector<1x2x128xf32>
    %9 = vector.shape_cast %8 : vector<1x2x128xf32> to vector<2x128xf32>
    %10 = vector.broadcast %4 : f32 to vector<2x128xf32>
    %11 = arith.mulf %9, %10 : vector<2x128xf32>
    %c0_4 = arith.constant 0 : index
    %c0_5 = arith.constant 0 : index
    %c0_6 = arith.constant 0 : index
    %12 = vector.load %arg4[%c0_4, %c0_5, %c0_6] : memref<1x8x128xf32, #tpu.memory_space<vmem>>, vector<1x2x128xf32>
    %13 = vector.shape_cast %12 : vector<1x2x128xf32> to vector<2x128xf32>
    %14 = vector.broadcast %7 : f32 to vector<2x128xf32>
    %15 = arith.mulf %13, %14 : vector<2x128xf32>
    %16 = tpu.concatenate %11, %1, %15 in 0 : vector<2x128xf32>, vector<32x128xf32>, vector<2x128xf32> -> vector<36x128xf32>
    %17 = arith.truncf %16 : vector<36x128xf32> to vector<36x128xbf16>
    %cst = arith.constant 0.000000e+00 : f32
    %18 = vector.broadcast %cst : f32 to vector<32x128xf32>
    %19 = vector.extract_strided_slice %17 {offsets = [0, 0], sizes = [32, 128], strides = [1, 1]} : vector<36x128xbf16> to vector<32x128xbf16>
    %c0_7 = arith.constant 0 : index
    %c0_8 = arith.constant 0 : index
    %c0_9 = arith.constant 0 : index
    %20 = vector.load %arg5[%c0_7, %c0_8, %c0_9] : memref<5x128x128xbf16, #tpu.memory_space<vmem>>, vector<1x128x128xbf16>
    %21 = vector.shape_cast %20 : vector<1x128x128xbf16> to vector<128x128xbf16>
    %cst_10 = arith.constant dense<0.000000e+00> : vector<32x128xf32>
    %22 = tpu.matmul %19, %21, %cst_10 {dimension_numbers = #tpu.dot_dimension_numbers<[1], [0], [0], [1], [0, 0, 1, 1], [], []>} : vector<32x128xbf16>, vector<128x128xbf16>, vector<32x128xf32> -> vector<32x128xf32>
    %23 = arith.addf %18, %22 : vector<32x128xf32>
    %24 = vector.extract_strided_slice %17 {offsets = [1, 0], sizes = [32, 128], strides = [1, 1]} : vector<36x128xbf16> to vector<32x128xbf16>
    %c1 = arith.constant 1 : index
    %c0_11 = arith.constant 0 : index
    %c0_12 = arith.constant 0 : index
    %25 = vector.load %arg5[%c1, %c0_11, %c0_12] : memref<5x128x128xbf16, #tpu.memory_space<vmem>>, vector<1x128x128xbf16>
    %26 = vector.shape_cast %25 : vector<1x128x128xbf16> to vector<128x128xbf16>
    %cst_13 = arith.constant dense<0.000000e+00> : vector<32x128xf32>
    %27 = tpu.matmul %24, %26, %cst_13 {dimension_numbers = #tpu.dot_dimension_numbers<[1], [0], [0], [1], [0, 0, 1, 1], [], []>} : vector<32x128xbf16>, vector<128x128xbf16>, vector<32x128xf32> -> vector<32x128xf32>
    %28 = arith.addf %23, %27 : vector<32x128xf32>
    %29 = vector.extract_strided_slice %17 {offsets = [2, 0], sizes = [32, 128], strides = [1, 1]} : vector<36x128xbf16> to vector<32x128xbf16>
    %c2 = arith.constant 2 : index
    %c0_14 = arith.constant 0 : index
    %c0_15 = arith.constant 0 : index
    %30 = vector.load %arg5[%c2, %c0_14, %c0_15] : memref<5x128x128xbf16, #tpu.memory_space<vmem>>, vector<1x128x128xbf16>
    %31 = vector.shape_cast %30 : vector<1x128x128xbf16> to vector<128x128xbf16>
    %cst_16 = arith.constant dense<0.000000e+00> : vector<32x128xf32>
    %32 = tpu.matmul %29, %31, %cst_16 {dimension_numbers = #tpu.dot_dimension_numbers<[1], [0], [0], [1], [0, 0, 1, 1], [], []>} : vector<32x128xbf16>, vector<128x128xbf16>, vector<32x128xf32> -> vector<32x128xf32>
    %33 = arith.addf %28, %32 : vector<32x128xf32>
    %34 = vector.extract_strided_slice %17 {offsets = [3, 0], sizes = [32, 128], strides = [1, 1]} : vector<36x128xbf16> to vector<32x128xbf16>
    %c3 = arith.constant 3 : index
    %c0_17 = arith.constant 0 : index
    %c0_18 = arith.constant 0 : index
    %35 = vector.load %arg5[%c3, %c0_17, %c0_18] : memref<5x128x128xbf16, #tpu.memory_space<vmem>>, vector<1x128x128xbf16>
    %36 = vector.shape_cast %35 : vector<1x128x128xbf16> to vector<128x128xbf16>
    %cst_19 = arith.constant dense<0.000000e+00> : vector<32x128xf32>
    %37 = tpu.matmul %34, %36, %cst_19 {dimension_numbers = #tpu.dot_dimension_numbers<[1], [0], [0], [1], [0, 0, 1, 1], [], []>} : vector<32x128xbf16>, vector<128x128xbf16>, vector<32x128xf32> -> vector<32x128xf32>
    %38 = arith.addf %33, %37 : vector<32x128xf32>
    %39 = vector.extract_strided_slice %17 {offsets = [4, 0], sizes = [32, 128], strides = [1, 1]} : vector<36x128xbf16> to vector<32x128xbf16>
    %c4 = arith.constant 4 : index
    %c0_20 = arith.constant 0 : index
    %c0_21 = arith.constant 0 : index
    %40 = vector.load %arg5[%c4, %c0_20, %c0_21] : memref<5x128x128xbf16, #tpu.memory_space<vmem>>, vector<1x128x128xbf16>
    %41 = vector.shape_cast %40 : vector<1x128x128xbf16> to vector<128x128xbf16>
    %cst_22 = arith.constant dense<0.000000e+00> : vector<32x128xf32>
    %42 = tpu.matmul %39, %41, %cst_22 {dimension_numbers = #tpu.dot_dimension_numbers<[1], [0], [0], [1], [0, 0, 1, 1], [], []>} : vector<32x128xbf16>, vector<128x128xbf16>, vector<32x128xf32> -> vector<32x128xf32>
    %43 = arith.addf %38, %42 : vector<32x128xf32>
    %c0_23 = arith.constant 0 : index
    %c0_24 = arith.constant 0 : index
    %44 = vector.load %arg6[%c0_23, %c0_24] : memref<1x128xf32, #tpu.memory_space<vmem>>, vector<1x128xf32>
    %45 = vector.broadcast %44 : vector<1x128xf32> to vector<32x128xf32>
    %46 = arith.addf %43, %45 : vector<32x128xf32>
    %cst_25 = arith.constant 0.000000e+00 : f32
    %47 = vector.broadcast %cst_25 : f32 to vector<32x128xf32>
    %48 = arith.maximumf %46, %47 : vector<32x128xf32>
    %c0_26 = arith.constant 0 : index
    %c0_27 = arith.constant 0 : index
    %c0_28 = arith.constant 0 : index
    %49 = vector.load %arg7[%c0_26, %c0_27, %c0_28] : memref<1x32x128xf32, #tpu.memory_space<vmem>>, vector<1x32x128xf32>
    %50 = vector.shape_cast %49 : vector<1x32x128xf32> to vector<32x128xf32>
    %51 = vector.shape_cast %48 : vector<32x128xf32> to vector<1x32x128xf32>
    tpu.vector_store %arg7[%c0_26, %c0_27, %c0_28], %51 {strides = array<i32>} : memref<1x32x128xf32, #tpu.memory_space<vmem>>, vector<1x32x128xf32>,
    return
  }
  func.func @transform_0(%arg0: i32, %arg1: i32) -> (i32, i32, i32) {
    %c0_i32 = arith.constant 0 : i32
    %c0_i32_0 = arith.constant 0 : i32
    return %arg0, %arg1, %c0_i32 : i32, i32, i32
  }
  func.func @transform_1(%arg0: i32, %arg1: i32) -> (i32, i32, i32) {
    %c4_i32 = arith.constant 4 : i32
    %0 = arith.muli %arg1, %c4_i32 : i32
    %c1_i32 = arith.constant 1 : i32
    %1 = arith.subi %0, %c1_i32 : i32
    %c0_i32 = arith.constant 0 : i32
    %2 = arith.maxsi %1, %c0_i32 : i32
    %c0_i32_0 = arith.constant 0 : i32
    %c0_i32_1 = arith.constant 0 : i32
    return %arg0, %2, %c0_i32_0 : i32, i32, i32
  }
  func.func @transform_2(%arg0: i32, %arg1: i32) -> (i32, i32, i32) {
    %c1_i32 = arith.constant 1 : i32
    %0 = arith.addi %arg1, %c1_i32 : i32
    %c4_i32 = arith.constant 4 : i32
    %1 = arith.muli %0, %c4_i32 : i32
    %c11_i32 = arith.constant 11 : i32
    %2 = arith.minsi %1, %c11_i32 : i32
    %c0_i32 = arith.constant 0 : i32
    %c0_i32_0 = arith.constant 0 : i32
    return %arg0, %2, %c0_i32 : i32, i32, i32
  }
  func.func @transform_3(%arg0: i32, %arg1: i32) -> (i32, i32, i32) {
    %c0_i32 = arith.constant 0 : i32
    %c0_i32_0 = arith.constant 0 : i32
    %c0_i32_1 = arith.constant 0 : i32
    %c0_i32_2 = arith.constant 0 : i32
    return %c0_i32, %c0_i32_0, %c0_i32_1 : i32, i32, i32
  }
  func.func @transform_4(%arg0: i32, %arg1: i32) -> (i32, i32) {
    %c0_i32 = arith.constant 0 : i32
    %c0_i32_0 = arith.constant 0 : i32
    %c0_i32_1 = arith.constant 0 : i32
    return %c0_i32, %c0_i32_0 : i32, i32
  }
  func.func @transform_5(%arg0: i32, %arg1: i32) -> (i32, i32, i32) {
    %c0_i32 = arith.constant 0 : i32
    %c0_i32_0 = arith.constant 0 : i32
    return %arg0, %arg1, %c0_i32 : i32, i32, i32
  }
}

</mosaic_0001>

<llo_original>
// kernel: tpu_custom_call.1
$region0: #{tpu_custom_call.1}
  #allocation0 [shape = 'u32[]', space=smem, size = 0x4, offset = 0x4, fixed_abs, tag = 'smem constant byte address 0x4 - core index']
  #allocation1 [shape = 'u32[144,128]{1,0:T(1,128)}', space=vmem, size = 0x12000, scoped, tag = 'internal scratch']
  %s0 = inlined_call_operand.hbm [shape: f32[2,96,128], index: 0, kind: input, shape index: {}]
  %s1 = inlined_call_operand.hbm [shape: f32[2,96,128], index: 1, kind: input, shape index: {}]
  %s2 = inlined_call_operand.hbm [shape: f32[2,96,128], index: 2, kind: input, shape index: {}]
  %s3 = inlined_call_operand.hbm [shape: bf16[5,128,128], index: 3, kind: input, shape index: {}]
  %s4 = inlined_call_operand.vmem [shape: f32[1,128], index: 4, kind: input, shape index: {}]
  %s5 = inlined_call_operand.hbm [shape: f32[2,96,128], index: 5, kind: output, shape index: {}]
  %s6 = sld [smem:[#allocation0]]
  $region69: #{tpu_custom_call.1} parent=0
    _
  %s8 = ssub.s32 1, %s6
  %s9 = scalar_select 0, %s8, %s6
  $region1: #{tpu_custom_call.1} parent=0
    #allocation2 [shape = 'u8[32768]{0}', space=vmem, size = 0x8000, scoped, tag = 'input window, operand 0']
    #allocation3 [shape = 's32[2]{0}', space=sflag, size = 0x8, scoped, tag = 'scoped memory for tpu_custom_call.1']
    #allocation4 [shape = 's32[2]{0}', space=sflag, size = 0x8, scoped, tag = 'scoped memory for tpu_custom_call.1']
    #allocation5 [shape = 'u8[8192]{0}', space=vmem, size = 0x2000, scoped, tag = 'input window, operand 1']
    #allocation6 [shape = 's32[2]{0}', space=sflag, size = 0x8, scoped, tag = 'scoped memory for tpu_custom_call.1']
    #allocation7 [shape = 'u8[8192]{0}', space=vmem, size = 0x2000, scoped, tag = 'input window, operand 2']
    #allocation8 [shape = 'u8[163840]{0}', space=vmem, size = 0x28000, scoped, tag = 'input window, operand 3, single buffered']
    #allocation9 [shape = 's32[1]{0}', space=sflag, size = 0x4, scoped, tag = 'scoped memory for tpu_custom_call.1']
    #allocation10 [shape = 'u8[32768]{0}', space=vmem, size = 0x8000, scoped, tag = 'output window, operand 0']
    %10 = vsyncpa [#allocation3], 0
    %s11 = scalar_lea.sflag [#allocation3], 1
    %12 = vsyncpa %s11, 0
    %13 = vsyncpa [#allocation6], 0
    %s14 = scalar_lea.sflag [#allocation6], 1
    %15 = vsyncpa %s14, 0
    %16 = vsyncpa [#allocation9], 0
    %17 = vsyncpa [#allocation4], 0
    %s18 = scalar_lea.sflag [#allocation4], 1
    %19 = vsyncpa %s18, 0
    loop: start=0, step=1, limit=8
    $region2: #{tpu_custom_call.1} parent=1 // loop_pre_header
      _
    $region3: #{tpu_custom_call.1} parent=1 // loop_header
      %s21 = sphi 0, %s25
      %p22 = scmp.ge.s32.totalorder %s21, 8
      %s28 = sphi 0, %s40
      %s29 = sphi 0, %s36
      %s30 = sphi 0, %s28
      %s31 = sphi 0, %s29
      %s32 = sphi 0, %s30
      %s33 = sphi 0, %s31
      %s45 = sphi 0, %s47
      %s48 = sphi 0, %s45
      %s49 = sphi 0, %s48
      %s65 = sphi 0, %s49
      %s81 = sphi 0, %s83
      %s84 = sphi 0, %s81
      %s85 = sphi 0, %s84
      %s101 = sphi 0, %s85
      %s117 = sphi 0, %s119
      %s120 = sphi 0, %s117
      %s121 = sphi 0, %s120
      %s137 = sphi 0, %s121
      %s141 = sphi 0, %s141
      %s143 = sphi 0, %s141
      %s144 = sphi 0, %s143
      %s158 = sphi 0, %s144
      %s162 = sphi 0, %s162
      %s164 = sphi 0, %s162
      %s165 = sphi 0, %s164
      %s179 = sphi 0, %s165
      %s187 = sphi 0, %s189
      %s190 = sphi 0, %s187
      %s191 = sphi 0, %s190
      %s207 = sphi 0, %s191
    $region4: #{tpu_custom_call.1} parent=1 // loop_header_branch
      %24 = sbr.rel (%p22) target = $region8
    $region5: #{tpu_custom_call.1} parent=1 // loop_body
      %s26 = ssub.s32 %s21, 1
      %s27 = ssub.s32 %s21, 2
      %s34 = sadd.s32 1, %s29
      %p35 = scmp.ge.s32.totalorder %s34, 3
      %s36 = scalar_select %p35, 0, %s34
      %s37 = sadd.s32 1, %s28
      %s38 = scalar_select %p35, %s37, %s28
      %p39 = scmp.ge.s32.totalorder %s38, 2
      %s40 = scalar_select %p39, 0, %s38
      %s41 = ssub.s32 %s28, %s40
      %s42 = ssub.s32 %s29, %s36
      %s43 = sor.u32 %s41, %s42
      %p44 = scmp.eq.s32.totalorder %s43, 0
      %s46 = sadd.s32 %s45, 1
      %s47 = scalar_select %p44, %s45, %s46
      %p50 = pneg %p44
      %p51 = scmp.eq.s32.totalorder %s21, 5
      %p52 = por %p50, %p51
      %p53 = scmp.ne.s32.totalorder %s45, %s48
      %p54 = scmp.eq.s32.totalorder %s21, 0
      %p55 = por %p53, %p54
      %p56 = scmp.ne.s32.totalorder %s45, %s48
      %p57 = scmp.eq.s32.totalorder %s26, 5
      %p58 = por %p56, %p57
      %p59 = scmp.ne.s32.totalorder %s48, %s49
      %p60 = scmp.eq.s32.totalorder %s26, 0
      %p61 = por %p59, %p60
      %p62 = scmp.ne.s32.totalorder %s48, %s49
      %p63 = scmp.eq.s32.totalorder %s27, 5
      %p64 = por %p62, %p63
      %p66 = scmp.ne.s32.totalorder %s49, %s65
      %p67 = scmp.eq.s32.totalorder %s27, 0
      %p68 = por %p66, %p67
      %s69 = smul.u32 %s29, 4
      %s70 = ssub.s32 %s69, 1
      %p71 = scmp.gt.s32.totalorder %s70, 0
      %s72 = scalar_select %p71, %s70, 0
      %s73 = smul.u32 %s36, 4
      %s74 = ssub.s32 %s73, 1
      %p75 = scmp.gt.s32.totalorder %s74, 0
      %s76 = scalar_select %p75, %s74, 0
      %s77 = ssub.s32 %s28, %s40
      %s78 = ssub.s32 %s72, %s76
      %s79 = sor.u32 %s77, %s78
      %p80 = scmp.eq.s32.totalorder %s79, 0
      %s82 = sadd.s32 %s81, 1
      %s83 = scalar_select %p80, %s81, %s82
      %p86 = pneg %p80
      %p87 = scmp.eq.s32.totalorder %s21, 5
      %p88 = por %p86, %p87
      %p89 = scmp.ne.s32.totalorder %s81, %s84
      %p90 = scmp.eq.s32.totalorder %s21, 0
      %p91 = por %p89, %p90
      %p92 = scmp.ne.s32.totalorder %s81, %s84
      %p93 = scmp.eq.s32.totalorder %s26, 5
      %p94 = por %p92, %p93
      %p95 = scmp.ne.s32.totalorder %s84, %s85
      %p96 = scmp.eq.s32.totalorder %s26, 0
      %p97 = por %p95, %p96
      %p98 = scmp.ne.s32.totalorder %s84, %s85
      %p99 = scmp.eq.s32.totalorder %s27, 5
      %p100 = por %p98, %p99
      %p102 = scmp.ne.s32.totalorder %s85, %s101
      %p103 = scmp.eq.s32.totalorder %s27, 0
      %p104 = por %p102, %p103
      %s105 = sadd.s32 %s29, 1
      %s106 = smul.u32 %s105, 4
      %p107 = scmp.lt.s32.totalorder %s106, 11
      %s108 = scalar_select %p107, %s106, 11
      %s109 = sadd.s32 %s36, 1
      %s110 = smul.u32 %s109, 4
      %p111 = scmp.lt.s32.totalorder %s110, 11
      %s112 = scalar_select %p111, %s110, 11
      %s113 = ssub.s32 %s28, %s40
      %s114 = ssub.s32 %s108, %s112
      %s115 = sor.u32 %s113, %s114
      %p116 = scmp.eq.s32.totalorder %s115, 0
      %s118 = sadd.s32 %s117, 1
      %s119 = scalar_select %p116, %s117, %s118
      %p122 = pneg %p116
      %p123 = scmp.eq.s32.totalorder %s21, 5
      %p124 = por %p122, %p123
      %p125 = scmp.ne.s32.totalorder %s117, %s120
      %p126 = scmp.eq.s32.totalorder %s21, 0
      %p127 = por %p125, %p126
      %p128 = scmp.ne.s32.totalorder %s117, %s120
      %p129 = scmp.eq.s32.totalorder %s26, 5
      %p130 = por %p128, %p129
      %p131 = scmp.ne.s32.totalorder %s120, %s121
      %p132 = scmp.eq.s32.totalorder %s26, 0
      %p133 = por %p131, %p132
      %p134 = scmp.ne.s32.totalorder %s120, %s121
      %p135 = scmp.eq.s32.totalorder %s27, 5
      %p136 = por %p134, %p135
      %p138 = scmp.ne.s32.totalorder %s121, %s137
      %p139 = scmp.eq.s32.totalorder %s27, 0
      %p140 = por %p138, %p139
      %s142 = sadd.s32 %s141, 1
      %p145 = scmp.eq.s32.totalorder %s21, 5
      %p146 = scmp.ne.s32.totalorder %s141, %s143
      %p147 = scmp.eq.s32.totalorder %s21, 0
      %p148 = por %p146, %p147
      %p149 = scmp.ne.s32.totalorder %s141, %s143
      %p150 = scmp.eq.s32.totalorder %s26, 5
      %p151 = por %p149, %p150
      %p152 = scmp.ne.s32.totalorder %s143, %s144
      %p153 = scmp.eq.s32.totalorder %s26, 0
      %p154 = por %p152, %p153
      %p155 = scmp.ne.s32.totalorder %s143, %s144
      %p156 = scmp.eq.s32.totalorder %s27, 5
      %p157 = por %p155, %p156
      %p159 = scmp.ne.s32.totalorder %s144, %s158
      %p160 = scmp.eq.s32.totalorder %s27, 0
      %p161 = por %p159, %p160
      %s163 = sadd.s32 %s162, 1
      %p166 = scmp.eq.s32.totalorder %s21, 5
      %p167 = scmp.ne.s32.totalorder %s162, %s164
      %p168 = scmp.eq.s32.totalorder %s21, 0
      %p169 = por %p167, %p168
      %p170 = scmp.ne.s32.totalorder %s162, %s164
      %p171 = scmp.eq.s32.totalorder %s26, 5
      %p172 = por %p170, %p171
      %p173 = scmp.ne.s32.totalorder %s164, %s165
      %p174 = scmp.eq.s32.totalorder %s26, 0
      %p175 = por %p173, %p174
      %p176 = scmp.ne.s32.totalorder %s164, %s165
      %p177 = scmp.eq.s32.totalorder %s27, 5
      %p178 = por %p176, %p177
      %p180 = scmp.ne.s32.totalorder %s165, %s179
      %p181 = scmp.eq.s32.totalorder %s27, 0
      %p182 = por %p180, %p181
      %s183 = ssub.s32 %s28, %s40
      %s184 = ssub.s32 %s29, %s36
      %s185 = sor.u32 %s183, %s184
      %p186 = scmp.eq.s32.totalorder %s185, 0
      %s188 = sadd.s32 %s187, 1
      %s189 = scalar_select %p186, %s187, %s188
      %p192 = pneg %p186
      %p193 = scmp.eq.s32.totalorder %s21, 5
      %p194 = por %p192, %p193
      %p195 = scmp.ne.s32.totalorder %s187, %s190
      %p196 = scmp.eq.s32.totalorder %s21, 0
      %p197 = por %p195, %p196
      %p198 = scmp.ne.s32.totalorder %s187, %s190
      %p199 = scmp.eq.s32.totalorder %s26, 5
      %p200 = por %p198, %p199
      %p201 = scmp.ne.s32.totalorder %s190, %s191
      %p202 = scmp.eq.s32.totalorder %s26, 0
      %p203 = por %p201, %p202
      %p204 = scmp.ne.s32.totalorder %s190, %s191
      %p205 = scmp.eq.s32.totalorder %s27, 5
      %p206 = por %p204, %p205
      %p208 = scmp.ne.s32.totalorder %s191, %s207
      %p209 = scmp.eq.s32.totalorder %s27, 0
      %p210 = por %p208, %p209
      %p211 = scmp.le.s32.totalorder 1, %s21
      %p212 = scmp.lt.s32.totalorder %s21, 7
      %p213 = pnand %p211, %p212
      %p214 = pneg %p213
      // Predicated region
      $region9: #{tpu_custom_call.1} parent=5 // pred_check
        _
      $region10: #{tpu_custom_call.1} parent=5 // pred_check_branch
        %216 = sbr.rel (%p213) target = $region12
      $region11: #{tpu_custom_call.1} parent=5 // pred_region
        %s217 = ssub.s32 %s21, 1
        // Predicated region
        $region13: #{tpu_custom_call.1} parent=11 // pred_check
          %p218 = pneg %p154
        $region14: #{tpu_custom_call.1} parent=11 // pred_check_branch
          %220 = sbr.rel (%p218) target = $region16
        $region15: #{tpu_custom_call.1} parent=11 // pred_region
          %s222 = ssub.s32 5120, 5120
          %223 = vsyncadd [#allocation9], %s222
          %s224 = sshll.u32 [#allocation8], 4
          %s225 = int_to_ptr.vmem [resolvable:$true] %s224
          %230 = dma.hbm_to_vmem [thread:$0]  %s3, 5120, %s225, [#allocation9], 64, 64, 4
        $region16: #{tpu_custom_call.1} parent=11 // pred_fallthru
          _
        // Predicated region
        $region17: #{tpu_custom_call.1} parent=11 // pred_check
          %p231 = pneg %p175
        $region18: #{tpu_custom_call.1} parent=11 // pred_check_branch
          %233 = sbr.rel (%p231) target = $region20
        $region19: #{tpu_custom_call.1} parent=11 // pred_region
          _
        $region20: #{tpu_custom_call.1} parent=11 // pred_fallthru
          _
      $region12: #{tpu_custom_call.1} parent=5 // pred_fallthru
        _
      %p234 = scmp.lt.s32.totalorder %s21, 6
      // Predicated region
      $region21: #{tpu_custom_call.1} parent=5 // pred_check
        %p235 = pneg %p234
      $region22: #{tpu_custom_call.1} parent=5 // pred_check_branch
        %237 = sbr.rel (%p235) target = $region24
      $region23: #{tpu_custom_call.1} parent=5 // pred_region
        // Predicated region
        $region25: #{tpu_custom_call.1} parent=23 // pred_check
          %p238 = pneg %p55
        $region26: #{tpu_custom_call.1} parent=23 // pred_check_branch
          %240 = sbr.rel (%p238) target = $region28
        $region27: #{tpu_custom_call.1} parent=23 // pred_region
          %s241 = sand.u32 %s45, 1
          %s242 = scalar_lea.sflag [#allocation3], %s241
          %s243 = sand.u32 %s45, 1
          %s244 = smul.addr %s243, 32
          %s245 = scalar_lea.vmem [#allocation2], %s244
          %s246 = smul.u32 4, %s29
          %s248 = ssub.s32 512, 512
          %249 = vsyncadd %s242, %s248
          %s250 = smul.addr %s28, 12
          %s251 = sadd.s32 %s246, %s250
          %s252 = smul.addr %s251, 128
          %s253 = scalar_lea.hbm %s0, %s252
          %s254 = sshll.u32 %s245, 4
          %s255 = int_to_ptr.vmem [resolvable:$true] %s254
          %260 = dma.hbm_to_vmem [thread:$0]  %s253, 512, %s255, %s242, 128, 128, 8
        $region28: #{tpu_custom_call.1} parent=23 // pred_fallthru
          _
        // Predicated region
        $region29: #{tpu_custom_call.1} parent=23 // pred_check
          %p261 = pneg %p91
        $region30: #{tpu_custom_call.1} parent=23 // pred_check_branch
          %263 = sbr.rel (%p261) target = $region32
        $region31: #{tpu_custom_call.1} parent=23 // pred_region
          %s264 = sand.u32 %s21, 1
          %s265 = scalar_lea.sflag [#allocation6], %s264
          %s266 = sand.u32 %s81, 1
          %s267 = smul.addr %s266, 8
          %s268 = scalar_lea.vmem [#allocation5], %s267
          %s269 = smul.u32 %s29, 4
          %s270 = ssub.s32 %s269, 1
          %p271 = scmp.gt.s32.totalorder %s270, 0
          %s272 = scalar_select %p271, %s270, 0
          %s274 = ssub.s32 128, 128
          %275 = vsyncadd %s265, %s274
          %s276 = smul.addr %s28, 12
          %s277 = sadd.s32 %s272, %s276
          %s278 = smul.addr %s277, 128
          %s279 = scalar_lea.hbm %s1, %s278
          %s281 = sshll.u32 %s268, 4
          %s282 = int_to_ptr.vmem [resolvable:$true] %s281
          %284 = dma.hbm_to_vmem [thread:$0]  %s279, 128, %s282, %s265
        $region32: #{tpu_custom_call.1} parent=23 // pred_fallthru
          _
        // Predicated region
        $region33: #{tpu_custom_call.1} parent=23 // pred_check
          %p285 = pneg %p127
        $region34: #{tpu_custom_call.1} parent=23 // pred_check_branch
          %287 = sbr.rel (%p285) target = $region36
        $region35: #{tpu_custom_call.1} parent=23 // pred_region
          %s288 = sand.u32 %s21, 1
          %s289 = scalar_lea.sflag [#allocation6], %s288
          %s290 = sand.u32 %s117, 1
          %s291 = smul.addr %s290, 8
          %s292 = scalar_lea.vmem [#allocation7], %s291
          %s293 = sadd.s32 %s29, 1
          %s294 = smul.u32 %s293, 4
          %p295 = scmp.lt.s32.totalorder %s294, 11
          %s296 = scalar_select %p295, %s294, 11
          %s298 = ssub.s32 128, 128
          %299 = vsyncadd %s289, %s298
          %s300 = smul.addr %s28, 12
          %s301 = sadd.s32 %s296, %s300
          %s302 = smul.addr %s301, 128
          %s303 = scalar_lea.hbm %s2, %s302
          %s305 = sshll.u32 %s292, 4
          %s306 = int_to_ptr.vmem [resolvable:$true] %s305
          %308 = dma.hbm_to_vmem [thread:$0]  %s303, 128, %s306, %s289
        $region36: #{tpu_custom_call.1} parent=23 // pred_fallthru
          _
      $region24: #{tpu_custom_call.1} parent=5 // pred_fallthru
        _
      %p309 = scmp.le.s32.totalorder 1, %s21
      %p310 = scmp.lt.s32.totalorder %s21, 7
      %p311 = pnand %p309, %p310
      %p312 = pneg %p311
      // Predicated region
      $region37: #{tpu_custom_call.1} parent=5 // pred_check
        _
      $region38: #{tpu_custom_call.1} parent=5 // pred_check_branch
        %314 = sbr.rel (%p311) target = $region40
      $region39: #{tpu_custom_call.1} parent=5 // pred_region
        %s315 = ssub.s32 %s21, 1
        %s316 = sand.u32 %s48, 1
        %s317 = scalar_lea.sflag [#allocation3], %s316
        %s318 = sand.u32 %s48, 1
        %s319 = smul.addr %s318, 32
        %s320 = scalar_lea.vmem [#allocation2], %s319
        // Predicated region
        $region41: #{tpu_custom_call.1} parent=39 // pred_check
          %p321 = pneg %p61
        $region42: #{tpu_custom_call.1} parent=39 // pred_check_branch
          %323 = sbr.rel (%p321) target = $region44
        $region43: #{tpu_custom_call.1} parent=39 // pred_region
          %324 = dma.done %s317, 512
        $region44: #{tpu_custom_call.1} parent=39 // pred_fallthru
          _
        %s325 = sand.u32 %s26, 1
        %s326 = scalar_lea.sflag [#allocation6], %s325
        %s327 = sand.u32 %s84, 1
        %s328 = smul.addr %s327, 8
        %s329 = scalar_lea.vmem [#allocation5], %s328
        // Predicated region
        $region45: #{tpu_custom_call.1} parent=39 // pred_check
          %p330 = pneg %p97
        $region46: #{tpu_custom_call.1} parent=39 // pred_check_branch
          %332 = sbr.rel (%p330) target = $region48
        $region47: #{tpu_custom_call.1} parent=39 // pred_region
          %333 = dma.done %s326, 128
        $region48: #{tpu_custom_call.1} parent=39 // pred_fallthru
          _
        %s334 = sand.u32 %s26, 1
        %s335 = scalar_lea.sflag [#allocation6], %s334
        %s336 = sand.u32 %s120, 1
        %s337 = smul.addr %s336, 8
        %s338 = scalar_lea.vmem [#allocation7], %s337
        // Predicated region
        $region49: #{tpu_custom_call.1} parent=39 // pred_check
          %p339 = pneg %p133
        $region50: #{tpu_custom_call.1} parent=39 // pred_check_branch
          %341 = sbr.rel (%p339) target = $region52
        $region51: #{tpu_custom_call.1} parent=39 // pred_region
          %342 = dma.done %s335, 128
        $region52: #{tpu_custom_call.1} parent=39 // pred_fallthru
          _
        // Predicated region
        $region53: #{tpu_custom_call.1} parent=39 // pred_check
          %p343 = pneg %p154
        $region54: #{tpu_custom_call.1} parent=39 // pred_check_branch
          %345 = sbr.rel (%p343) target = $region56
        $region55: #{tpu_custom_call.1} parent=39 // pred_region
          %346 = dma.done [#allocation9], 5120
        $region56: #{tpu_custom_call.1} parent=39 // pred_fallthru
          _
        %s347 = sand.u32 %s48, 1
        %s348 = scalar_lea.sflag [#allocation3], %s347
        %s349 = sand.u32 %s48, 1
        %s350 = smul.addr %s349, 32
        %s351 = scalar_lea.vmem [#allocation2], %s350
        %p352 = pneg %p61
        %p353 = pneg %p58
        %s354 = sand.u32 %s26, 1
        %s355 = scalar_lea.sflag [#allocation6], %s354
        %s356 = sand.u32 %s84, 1
        %s357 = smul.addr %s356, 8
        %s358 = scalar_lea.vmem [#allocation5], %s357
        %p359 = pneg %p97
        %p360 = pneg %p94
        %s361 = sand.u32 %s26, 1
        %s362 = scalar_lea.sflag [#allocation6], %s361
        %s363 = sand.u32 %s120, 1
        %s364 = smul.addr %s363, 8
        %s365 = scalar_lea.vmem [#allocation7], %s364
        %p366 = pneg %p133
        %p367 = pneg %p130
        %p368 = pneg %p154
        %p369 = pneg %p151
        %p370 = pneg %p175
        %p371 = pneg %p172
        %p372 = pneg %p203
        %p373 = pneg %p200
        %s374 = sand.u32 %s190, 1
        %s375 = scalar_lea.sflag [#allocation4], %s374
        %s376 = sand.u32 %s190, 1
        %s377 = smul.addr %s376, 32
        %s378 = scalar_lea.vmem [#allocation10], %s377
        %s379 = smul.u32 4, %s31
        %s380 = smul.u32 %s31, 4
        %s381 = ssub.s32 %s380, 1
        %p382 = scmp.gt.s32.totalorder %s381, 0
        %s383 = scalar_select %p382, %s381, 0
        %s384 = sadd.s32 %s31, 1
        %s385 = smul.u32 %s384, 4
        %p386 = scmp.lt.s32.totalorder %s385, 11
        %s387 = scalar_select %p386, %s385, 11
        %s388 = smul.u32 4, %s31
        %v390 = vld [vmem:[%s320] sm:$0xff]
        %v391 = vld [vmem:[%s320 + $0x8] sm:$0xff]
        %v392 = vld [vmem:[%s320 + $0x10] sm:$0xff]
        %v393 = vld [vmem:[%s320 + $0x18] sm:$0xff]
        %p394 = scmp.gt.s32.totalorder %s31, 0
        %s395 = scalar_select %p394, 1, 0
        %s396 = scvt.s32.f32 %s395
        %p397 = scmp.lt.s32.totalorder %s31, 2
        %s398 = scalar_select %p397, 1, 0
        %s399 = scvt.s32.f32 %s398
        %v400 = vld [vmem:[%s329 + $0x6] sm:$0x3]
        %v401 = vstv %s396
        %v402 = vmul.f32 %v400, %v401
        %v403 = vld [vmem:[%s338] sm:$0x3]
        %v404 = vstv %s399
        %v405 = vmul.f32 %v403, %v404
        %vm410 = vcmask 1041408
        %v411 = vrot.slane %v390, 6
        %v412 = vrot.slane %v391, 6
        %v413 = vsel %vm410, %v411, %v412
        %v414 = vrot.slane %v392, 6
        %v415 = vsel %vm410, %v412, %v414
        %v416 = vrot.slane %v393, 6
        %v417 = vsel %vm410, %v414, %v416
        %v424 = vrot.slane %v405, 6
        %v426 = vsel %vm410, %v402, %v411
        %v427 = vsel %vm410, %v416, %v424
        %v428 = vpack.c.bf16 %v413, %v426
        %v429 = vpack.c.bf16 %v417, %v415
        %v430 = vpack.c.bf16 %v427, %v427
        %v431 = vld [vmem:[#allocation8] sm:$0xf]
        %v432 = vld [vmem:[#allocation8 + $0x4] sm:$0xf]
        %v433 = vld [vmem:[#allocation8 + $0x8] sm:$0xf]
        %v434 = vld [vmem:[#allocation8 + $0xc] sm:$0xf]
        %v435 = vld [vmem:[#allocation8 + $0x10] sm:$0xf]
        %v436 = vld [vmem:[#allocation8 + $0x14] sm:$0xf]
        %v437 = vld [vmem:[#allocation8 + $0x18] sm:$0xf]
        %v438 = vld [vmem:[#allocation8 + $0x1c] sm:$0xf]
        %v439 = vld [vmem:[#allocation8 + $0x20] sm:$0xf]
        %v440 = vld [vmem:[#allocation8 + $0x24] sm:$0xf]
        %v441 = vld [vmem:[#allocation8 + $0x28] sm:$0xf]
        %v442 = vld [vmem:[#allocation8 + $0x2c] sm:$0xf]
        %v443 = vld [vmem:[#allocation8 + $0x30] sm:$0xf]
        %v444 = vld [vmem:[#allocation8 + $0x34] sm:$0xf]
        %v445 = vld [vmem:[#allocation8 + $0x38] sm:$0xf]
        %v446 = vld [vmem:[#allocation8 + $0x3c] sm:$0xf]
        %s447 = scalar_lea.vmem [#allocation8], 64
        %v448 = vld [vmem:[%s447] sm:$0xf]
        %v449 = vld [vmem:[%s447 + $0x4] sm:$0xf]
        %v450 = vld [vmem:[%s447 + $0x8] sm:$0xf]
        %v451 = vld [vmem:[%s447 + $0xc] sm:$0xf]
        %v452 = vld [vmem:[%s447 + $0x10] sm:$0xf]
        %v453 = vld [vmem:[%s447 + $0x14] sm:$0xf]
        %v454 = vld [vmem:[%s447 + $0x18] sm:$0xf]
        %v455 = vld [vmem:[%s447 + $0x1c] sm:$0xf]
        %v456 = vld [vmem:[%s447 + $0x20] sm:$0xf]
        %v457 = vld [vmem:[%s447 + $0x24] sm:$0xf]
        %v458 = vld [vmem:[%s447 + $0x28] sm:$0xf]
        %v459 = vld [vmem:[%s447 + $0x2c] sm:$0xf]
        %v460 = vld [vmem:[%s447 + $0x30] sm:$0xf]
        %v461 = vld [vmem:[%s447 + $0x34] sm:$0xf]
        %v462 = vld [vmem:[%s447 + $0x38] sm:$0xf]
        %v463 = vld [vmem:[%s447 + $0x3c] sm:$0xf]
        %vm464 = vsmask.f32 7424
        %v466 = vshrl.u32 %v428, 16
        %v468 = vshll.u32 %v428, 16
        %v470 = vrot.slane %v468, 1
        %v471 = vor.u32 %v466, %v470
        %v473 = vshll.u32 %v429, 16
        %v475 = vrot.slane %v473, 1
        %v476 = vsel %vm464, %v471, %v475
        %v477 = vshrl.u32 %v429, 16
        %v479 = vor.u32 %v477, %v475
        %v481 = vshll.u32 %v430, 16
        %v483 = vrot.slane %v481, 1
        %v484 = vsel %vm464, %v479, %v483
        %v503 = vunpack.c.l.b16 %v448
        %v504 = vunpack.c.l.b16 %v449
        %v505 = vunpack.c.l.b16 %v450
        %v506 = vunpack.c.l.b16 %v451
        %v507 = vunpack.c.l.b16 %v452
        %v508 = vunpack.c.l.b16 %v453
        %v509 = vunpack.c.l.b16 %v454
        %v510 = vunpack.c.l.b16 %v455
        %v511 = vunpack.c.l.b16 %v456
        %v512 = vunpack.c.l.b16 %v457
        %v513 = vunpack.c.l.b16 %v458
        %v514 = vunpack.c.l.b16 %v459
        %v515 = vunpack.c.l.b16 %v460
        %v516 = vunpack.c.l.b16 %v461
        %v517 = vunpack.c.l.b16 %v462
        %v518 = vunpack.c.l.b16 %v463
        %v519 = vpack.c.b16 %v504, %v503
        %v520 = vpack.c.b16 %v506, %v505
        %v521 = vpack.c.b16 %v508, %v507
        %v522 = vpack.c.b16 %v510, %v509
        %v523 = vpack.c.b16 %v512, %v511
        %v524 = vpack.c.b16 %v514, %v513
        %v525 = vpack.c.b16 %v516, %v515
        %v526 = vpack.c.b16 %v518, %v517
        %535 = vmatprep.subr.bf16.mxu0 0
        %536 = vmatpush1.bf16.msra.mxu0 %v526
        %537 = vmatprep.subr.bf16.mxu0 0
        %538 = vmatpush1.bf16.msra.mxu0 %v525
        %539 = vmatprep.subr.bf16.mxu0 0
        %540 = vmatpush1.bf16.msra.mxu0 %v524
        %541 = vmatprep.subr.bf16.mxu0 0
        %542 = vmatpush1.bf16.msra.mxu0 %v523
        %543 = vmatprep.subr.bf16.mxu0 0
        %544 = vmatpush1.bf16.msra.mxu0 %v522
        %545 = vmatprep.subr.bf16.mxu0 0
        %546 = vmatpush1.bf16.msra.mxu0 %v521
        %547 = vmatprep.subr.bf16.mxu0 0
        %548 = vmatpush1.bf16.msra.mxu0 %v520
        %549 = vmatprep.subr.bf16.mxu0 0
        %550 = vmatpush1.bf16.msra.mxu0 %v519
        %551 = vmatprep.subr.bf16.mxu0 0
        %552 = vmatpush2.bf16.msra.mxu0 0
        %553 = vmatprep.subr.bf16.mxu0 0
        %554 = vmatpush2.bf16.msra.mxu0 0
        %555 = vmatprep.subr.bf16.mxu0 0
        %556 = vmatpush2.bf16.msra.mxu0 0
        %557 = vmatprep.subr.bf16.mxu0 0
        %558 = vmatpush2.bf16.msra.mxu0 0
        %559 = vmatprep.subr.bf16.mxu0 0
        %560 = vmatpush2.bf16.msra.mxu0 0
        %561 = vmatprep.subr.bf16.mxu0 0
        %562 = vmatpush2.bf16.msra.mxu0 0
        %563 = vmatprep.subr.bf16.mxu0 0
        %564 = vmatpush2.bf16.msra.mxu0 0
        %565 = vmatprep.subr.bf16.mxu0 0
        %566 = vmatpush2.bf16.msra.mxu0 0
        %567 = vmatprep.mubr.bf16.mxu0 0
        %568 = vmatmul.mubr.bf16.gmra.mxu0 %v476
        %v569 = vpop.f32.mrf.mxu0
        %v570 = vadd.f32 0.0, %v569
        %v571 = vpop.f32.mrf.mxu0
        %v572 = vpop.f32.mrf.mxu0
        %v573 = vadd.f32 0.0, %v572
        %v574 = vpop.f32.mrf.mxu0
        %575 = vmatprep.mubr.bf16.mxu0 0
        %576 = vmatmul.mubr.bf16.gmra.mxu0 %v484
        %v577 = vpop.f32.mrf.mxu0
        %v578 = vadd.f32 0.0, %v577
        %v579 = vpop.f32.mrf.mxu0
        %v580 = vpop.f32.mrf.mxu0
        %v581 = vadd.f32 0.0, %v580
        %v582 = vpop.f32.mrf.mxu0
        %583 = vdwg.mxu0
        %v600 = vunpack.c.l.b16 %v431
        %v601 = vunpack.c.l.b16 %v432
        %v602 = vunpack.c.l.b16 %v433
        %v603 = vunpack.c.l.b16 %v434
        %v604 = vunpack.c.l.b16 %v435
        %v605 = vunpack.c.l.b16 %v436
        %v606 = vunpack.c.l.b16 %v437
        %v607 = vunpack.c.l.b16 %v438
        %v608 = vunpack.c.l.b16 %v439
        %v609 = vunpack.c.l.b16 %v440
        %v610 = vunpack.c.l.b16 %v441
        %v611 = vunpack.c.l.b16 %v442
        %v612 = vunpack.c.l.b16 %v443
        %v613 = vunpack.c.l.b16 %v444
        %v614 = vunpack.c.l.b16 %v445
        %v615 = vunpack.c.l.b16 %v446
        %v616 = vpack.c.b16 %v601, %v600
        %v617 = vpack.c.b16 %v603, %v602
        %v618 = vpack.c.b16 %v605, %v604
        %v619 = vpack.c.b16 %v607, %v606
        %v620 = vpack.c.b16 %v609, %v608
        %v621 = vpack.c.b16 %v611, %v610
        %v622 = vpack.c.b16 %v613, %v612
        %v623 = vpack.c.b16 %v615, %v614
        %632 = vmatprep.subr.bf16.mxu0 0
        %633 = vmatpush1.bf16.msra.mxu0 %v623
        %634 = vmatprep.subr.bf16.mxu0 0
        %635 = vmatpush1.bf16.msra.mxu0 %v622
        %636 = vmatprep.subr.bf16.mxu0 0
        %637 = vmatpush1.bf16.msra.mxu0 %v621
        %638 = vmatprep.subr.bf16.mxu0 0
        %639 = vmatpush1.bf16.msra.mxu0 %v620
        %640 = vmatprep.subr.bf16.mxu0 0
        %641 = vmatpush1.bf16.msra.mxu0 %v619
        %642 = vmatprep.subr.bf16.mxu0 0
        %643 = vmatpush1.bf16.msra.mxu0 %v618
        %644 = vmatprep.subr.bf16.mxu0 0
        %645 = vmatpush1.bf16.msra.mxu0 %v617
        %646 = vmatprep.subr.bf16.mxu0 0
        %647 = vmatpush1.bf16.msra.mxu0 %v616
        %648 = vmatprep.subr.bf16.mxu0 0
        %649 = vmatpush2.bf16.msra.mxu0 0
        %650 = vmatprep.subr.bf16.mxu0 0
        %651 = vmatpush2.bf16.msra.mxu0 0
        %652 = vmatprep.subr.bf16.mxu0 0
        %653 = vmatpush2.bf16.msra.mxu0 0
        %654 = vmatprep.subr.bf16.mxu0 0
        %655 = vmatpush2.bf16.msra.mxu0 0
        %656 = vmatprep.subr.bf16.mxu0 0
        %657 = vmatpush2.bf16.msra.mxu0 0
        %658 = vmatprep.subr.bf16.mxu0 0
        %659 = vmatpush2.bf16.msra.mxu0 0
        %660 = vmatprep.subr.bf16.mxu0 0
        %661 = vmatpush2.bf16.msra.mxu0 0
        %662 = vmatprep.subr.bf16.mxu0 0
        %663 = vmatpush2.bf16.msra.mxu0 0
        %664 = vmatprep.mubr.bf16.mxu0 0
        %665 = vmatmul.mubr.bf16.gmra.mxu0 %v428
        %v666 = vpop.f32.mrf.mxu0
        %v667 = vadd.f32 %v570, %v666
        %v668 = vpop.f32.mrf.mxu0
        %v669 = vpop.f32.mrf.mxu0
        %v670 = vadd.f32 %v573, %v669
        %v671 = vpop.f32.mrf.mxu0
        %672 = vmatprep.mubr.bf16.mxu0 0
        %673 = vmatmul.mubr.bf16.gmra.mxu0 %v429
        %v674 = vpop.f32.mrf.mxu0
        %v675 = vadd.f32 %v578, %v674
        %v676 = vpop.f32.mrf.mxu0
        %v677 = vpop.f32.mrf.mxu0
        %v678 = vadd.f32 %v581, %v677
        %v679 = vpop.f32.mrf.mxu0
        %680 = vdwg.mxu0
        %s681 = scalar_lea.vmem [#allocation8], 128
        %v682 = vld [vmem:[%s681] sm:$0xf]
        %v683 = vld [vmem:[%s681 + $0x4] sm:$0xf]
        %v684 = vld [vmem:[%s681 + $0x8] sm:$0xf]
        %v685 = vld [vmem:[%s681 + $0xc] sm:$0xf]
        %v686 = vld [vmem:[%s681 + $0x10] sm:$0xf]
        %v687 = vld [vmem:[%s681 + $0x14] sm:$0xf]
        %v688 = vld [vmem:[%s681 + $0x18] sm:$0xf]
        %v689 = vld [vmem:[%s681 + $0x1c] sm:$0xf]
        %v690 = vld [vmem:[%s681 + $0x20] sm:$0xf]
        %v691 = vld [vmem:[%s681 + $0x24] sm:$0xf]
        %v692 = vld [vmem:[%s681 + $0x28] sm:$0xf]
        %v693 = vld [vmem:[%s681 + $0x2c] sm:$0xf]
        %v694 = vld [vmem:[%s681 + $0x30] sm:$0xf]
        %v695 = vld [vmem:[%s681 + $0x34] sm:$0xf]
        %v696 = vld [vmem:[%s681 + $0x38] sm:$0xf]
        %v697 = vld [vmem:[%s681 + $0x3c] sm:$0xf]
        %vm701 = vcmask 1046528
        %v702 = vrot.slane %v428, 1
        %v703 = vrot.slane %v429, 1
        %v704 = vsel %vm701, %v702, %v703
        %v705 = vrot.slane %v430, 1
        %v706 = vsel %vm701, %v703, %v705
        %v725 = vunpack.c.l.b16 %v682
        %v726 = vunpack.c.l.b16 %v683
        %v727 = vunpack.c.l.b16 %v684
        %v728 = vunpack.c.l.b16 %v685
        %v729 = vunpack.c.l.b16 %v686
        %v730 = vunpack.c.l.b16 %v687
        %v731 = vunpack.c.l.b16 %v688
        %v732 = vunpack.c.l.b16 %v689
        %v733 = vunpack.c.l.b16 %v690
        %v734 = vunpack.c.l.b16 %v691
        %v735 = vunpack.c.l.b16 %v692
        %v736 = vunpack.c.l.b16 %v693
        %v737 = vunpack.c.l.b16 %v694
        %v738 = vunpack.c.l.b16 %v695
        %v739 = vunpack.c.l.b16 %v696
        %v740 = vunpack.c.l.b16 %v697
        %v741 = vpack.c.b16 %v726, %v725
        %v742 = vpack.c.b16 %v728, %v727
        %v743 = vpack.c.b16 %v730, %v729
        %v744 = vpack.c.b16 %v732, %v731
        %v745 = vpack.c.b16 %v734, %v733
        %v746 = vpack.c.b16 %v736, %v735
        %v747 = vpack.c.b16 %v738, %v737
        %v748 = vpack.c.b16 %v740, %v739
        %757 = vmatprep.subr.bf16.mxu0 0
        %758 = vmatpush1.bf16.msra.mxu0 %v748
        %759 = vmatprep.subr.bf16.mxu0 0
        %760 = vmatpush1.bf16.msra.mxu0 %v747
        %761 = vmatprep.subr.bf16.mxu0 0
        %762 = vmatpush1.bf16.msra.mxu0 %v746
        %763 = vmatprep.subr.bf16.mxu0 0
        %764 = vmatpush1.bf16.msra.mxu0 %v745
        %765 = vmatprep.subr.bf16.mxu0 0
        %766 = vmatpush1.bf16.msra.mxu0 %v744
        %767 = vmatprep.subr.bf16.mxu0 0
        %768 = vmatpush1.bf16.msra.mxu0 %v743
        %769 = vmatprep.subr.bf16.mxu0 0
        %770 = vmatpush1.bf16.msra.mxu0 %v742
        %771 = vmatprep.subr.bf16.mxu0 0
        %772 = vmatpush1.bf16.msra.mxu0 %v741
        %773 = vmatprep.subr.bf16.mxu0 0
        %774 = vmatpush2.bf16.msra.mxu0 0
        %775 = vmatprep.subr.bf16.mxu0 0
        %776 = vmatpush2.bf16.msra.mxu0 0
        %777 = vmatprep.subr.bf16.mxu0 0
        %778 = vmatpush2.bf16.msra.mxu0 0
        %779 = vmatprep.subr.bf16.mxu0 0
        %780 = vmatpush2.bf16.msra.mxu0 0
        %781 = vmatprep.subr.bf16.mxu0 0
        %782 = vmatpush2.bf16.msra.mxu0 0
        %783 = vmatprep.subr.bf16.mxu0 0
        %784 = vmatpush2.bf16.msra.mxu0 0
        %785 = vmatprep.subr.bf16.mxu0 0
        %786 = vmatpush2.bf16.msra.mxu0 0
        %787 = vmatprep.subr.bf16.mxu0 0
        %788 = vmatpush2.bf16.msra.mxu0 0
        %789 = vmatprep.mubr.bf16.mxu0 0
        %790 = vmatmul.mubr.bf16.gmra.mxu0 %v704
        %v791 = vpop.f32.mrf.mxu0
        %v792 = vadd.f32 0.0, %v791
        %v793 = vpop.f32.mrf.mxu0
        %v794 = vpop.f32.mrf.mxu0
        %v795 = vadd.f32 0.0, %v794
        %v796 = vpop.f32.mrf.mxu0
        %797 = vmatprep.mubr.bf16.mxu0 0
        %798 = vmatmul.mubr.bf16.gmra.mxu0 %v706
        %v799 = vpop.f32.mrf.mxu0
        %v800 = vadd.f32 0.0, %v799
        %v801 = vpop.f32.mrf.mxu0
        %v802 = vpop.f32.mrf.mxu0
        %v803 = vadd.f32 0.0, %v802
        %v804 = vpop.f32.mrf.mxu0
        %805 = vdwg.mxu0
        %v806 = vadd.f32 %v667, %v792
        %v807 = vadd.f32 %v670, %v795
        %v808 = vadd.f32 %v675, %v800
        %v809 = vadd.f32 %v678, %v803
        %s810 = scalar_lea.vmem [#allocation8], 192
        %v811 = vld [vmem:[%s810] sm:$0xf]
        %v812 = vld [vmem:[%s810 + $0x4] sm:$0xf]
        %v813 = vld [vmem:[%s810 + $0x8] sm:$0xf]
        %v814 = vld [vmem:[%s810 + $0xc] sm:$0xf]
        %v815 = vld [vmem:[%s810 + $0x10] sm:$0xf]
        %v816 = vld [vmem:[%s810 + $0x14] sm:$0xf]
        %v817 = vld [vmem:[%s810 + $0x18] sm:$0xf]
        %v818 = vld [vmem:[%s810 + $0x1c] sm:$0xf]
        %v819 = vld [vmem:[%s810 + $0x20] sm:$0xf]
        %v820 = vld [vmem:[%s810 + $0x24] sm:$0xf]
        %v821 = vld [vmem:[%s810 + $0x28] sm:$0xf]
        %v822 = vld [vmem:[%s810 + $0x2c] sm:$0xf]
        %v823 = vld [vmem:[%s810 + $0x30] sm:$0xf]
        %v824 = vld [vmem:[%s810 + $0x34] sm:$0xf]
        %v825 = vld [vmem:[%s810 + $0x38] sm:$0xf]
        %v826 = vld [vmem:[%s810 + $0x3c] sm:$0xf]
        %vm827 = vsmask.f32 6400
        %v828 = vrot.slane %v466, 1
        %v829 = vrot.slane %v468, 2
        %v830 = vor.u32 %v828, %v829
        %v831 = vrot.slane %v477, 1
        %v832 = vrot.slane %v473, 2
        %v833 = vor.u32 %v831, %v832
        %v834 = vsel %vm827, %v830, %v833
        %v835 = vshrl.u32 %v430, 16
        %v837 = vrot.slane %v835, 1
        %v838 = vrot.slane %v481, 2
        %v839 = vor.u32 %v837, %v838
        %v840 = vsel %vm827, %v833, %v839
        %v859 = vunpack.c.l.b16 %v811
        %v860 = vunpack.c.l.b16 %v812
        %v861 = vunpack.c.l.b16 %v813
        %v862 = vunpack.c.l.b16 %v814
        %v863 = vunpack.c.l.b16 %v815
        %v864 = vunpack.c.l.b16 %v816
        %v865 = vunpack.c.l.b16 %v817
        %v866 = vunpack.c.l.b16 %v818
        %v867 = vunpack.c.l.b16 %v819
        %v868 = vunpack.c.l.b16 %v820
        %v869 = vunpack.c.l.b16 %v821
        %v870 = vunpack.c.l.b16 %v822
        %v871 = vunpack.c.l.b16 %v823
        %v872 = vunpack.c.l.b16 %v824
        %v873 = vunpack.c.l.b16 %v825
        %v874 = vunpack.c.l.b16 %v826
        %v875 = vpack.c.b16 %v860, %v859
        %v876 = vpack.c.b16 %v862, %v861
        %v877 = vpack.c.b16 %v864, %v863
        %v878 = vpack.c.b16 %v866, %v865
        %v879 = vpack.c.b16 %v868, %v867
        %v880 = vpack.c.b16 %v870, %v869
        %v881 = vpack.c.b16 %v872, %v871
        %v882 = vpack.c.b16 %v874, %v873
        %891 = vmatprep.subr.bf16.mxu0 0
        %892 = vmatpush1.bf16.msra.mxu0 %v882
        %893 = vmatprep.subr.bf16.mxu0 0
        %894 = vmatpush1.bf16.msra.mxu0 %v881
        %895 = vmatprep.subr.bf16.mxu0 0
        %896 = vmatpush1.bf16.msra.mxu0 %v880
        %897 = vmatprep.subr.bf16.mxu0 0
        %898 = vmatpush1.bf16.msra.mxu0 %v879
        %899 = vmatprep.subr.bf16.mxu0 0
        %900 = vmatpush1.bf16.msra.mxu0 %v878
        %901 = vmatprep.subr.bf16.mxu0 0
        %902 = vmatpush1.bf16.msra.mxu0 %v877
        %903 = vmatprep.subr.bf16.mxu0 0
        %904 = vmatpush1.bf16.msra.mxu0 %v876
        %905 = vmatprep.subr.bf16.mxu0 0
        %906 = vmatpush1.bf16.msra.mxu0 %v875
        %907 = vmatprep.subr.bf16.mxu0 0
        %908 = vmatpush2.bf16.msra.mxu0 0
        %909 = vmatprep.subr.bf16.mxu0 0
        %910 = vmatpush2.bf16.msra.mxu0 0
        %911 = vmatprep.subr.bf16.mxu0 0
        %912 = vmatpush2.bf16.msra.mxu0 0
        %913 = vmatprep.subr.bf16.mxu0 0
        %914 = vmatpush2.bf16.msra.mxu0 0
        %915 = vmatprep.subr.bf16.mxu0 0
        %916 = vmatpush2.bf16.msra.mxu0 0
        %917 = vmatprep.subr.bf16.mxu0 0
        %918 = vmatpush2.bf16.msra.mxu0 0
        %919 = vmatprep.subr.bf16.mxu0 0
        %920 = vmatpush2.bf16.msra.mxu0 0
        %921 = vmatprep.subr.bf16.mxu0 0
        %922 = vmatpush2.bf16.msra.mxu0 0
        %923 = vmatprep.mubr.bf16.mxu0 0
        %924 = vmatmul.mubr.bf16.gmra.mxu0 %v834
        %v925 = vpop.f32.mrf.mxu0
        %v926 = vadd.f32 0.0, %v925
        %v927 = vpop.f32.mrf.mxu0
        %v928 = vpop.f32.mrf.mxu0
        %v929 = vadd.f32 0.0, %v928
        %v930 = vpop.f32.mrf.mxu0
        %931 = vmatprep.mubr.bf16.mxu0 0
        %932 = vmatmul.mubr.bf16.gmra.mxu0 %v840
        %v933 = vpop.f32.mrf.mxu0
        %v934 = vadd.f32 0.0, %v933
        %v935 = vpop.f32.mrf.mxu0
        %v936 = vpop.f32.mrf.mxu0
        %v937 = vadd.f32 0.0, %v936
        %v938 = vpop.f32.mrf.mxu0
        %939 = vdwg.mxu0
        %v940 = vadd.f32 %v806, %v926
        %v941 = vadd.f32 %v807, %v929
        %v942 = vadd.f32 %v808, %v934
        %v943 = vadd.f32 %v809, %v937
        %s944 = scalar_lea.vmem [#allocation8], 256
        %v945 = vld [vmem:[%s944] sm:$0xf]
        %v946 = vld [vmem:[%s944 + $0x4] sm:$0xf]
        %v947 = vld [vmem:[%s944 + $0x8] sm:$0xf]
        %v948 = vld [vmem:[%s944 + $0xc] sm:$0xf]
        %v949 = vld [vmem:[%s944 + $0x10] sm:$0xf]
        %v950 = vld [vmem:[%s944 + $0x14] sm:$0xf]
        %v951 = vld [vmem:[%s944 + $0x18] sm:$0xf]
        %v952 = vld [vmem:[%s944 + $0x1c] sm:$0xf]
        %v953 = vld [vmem:[%s944 + $0x20] sm:$0xf]
        %v954 = vld [vmem:[%s944 + $0x24] sm:$0xf]
        %v955 = vld [vmem:[%s944 + $0x28] sm:$0xf]
        %v956 = vld [vmem:[%s944 + $0x2c] sm:$0xf]
        %v957 = vld [vmem:[%s944 + $0x30] sm:$0xf]
        %v958 = vld [vmem:[%s944 + $0x34] sm:$0xf]
        %v959 = vld [vmem:[%s944 + $0x38] sm:$0xf]
        %v960 = vld [vmem:[%s944 + $0x3c] sm:$0xf]
        %vm961 = vcmask 1045504
        %v962 = vrot.slane %v428, 2
        %v963 = vrot.slane %v429, 2
        %v964 = vsel %vm961, %v962, %v963
        %v965 = vrot.slane %v430, 2
        %v966 = vsel %vm961, %v963, %v965
        %v985 = vunpack.c.l.b16 %v945
        %v986 = vunpack.c.l.b16 %v946
        %v987 = vunpack.c.l.b16 %v947
        %v988 = vunpack.c.l.b16 %v948
        %v989 = vunpack.c.l.b16 %v949
        %v990 = vunpack.c.l.b16 %v950
        %v991 = vunpack.c.l.b16 %v951
        %v992 = vunpack.c.l.b16 %v952
        %v993 = vunpack.c.l.b16 %v953
        %v994 = vunpack.c.l.b16 %v954
        %v995 = vunpack.c.l.b16 %v955
        %v996 = vunpack.c.l.b16 %v956
        %v997 = vunpack.c.l.b16 %v957
        %v998 = vunpack.c.l.b16 %v958
        %v999 = vunpack.c.l.b16 %v959
        %v1000 = vunpack.c.l.b16 %v960
        %v1001 = vpack.c.b16 %v986, %v985
        %v1002 = vpack.c.b16 %v988, %v987
        %v1003 = vpack.c.b16 %v990, %v989
        %v1004 = vpack.c.b16 %v992, %v991
        %v1005 = vpack.c.b16 %v994, %v993
        %v1006 = vpack.c.b16 %v996, %v995
        %v1007 = vpack.c.b16 %v998, %v997
        %v1008 = vpack.c.b16 %v1000, %v999
        %1017 = vmatprep.subr.bf16.mxu0 0
        %1018 = vmatpush1.bf16.msra.mxu0 %v1008
        %1019 = vmatprep.subr.bf16.mxu0 0
        %1020 = vmatpush1.bf16.msra.mxu0 %v1007
        %1021 = vmatprep.subr.bf16.mxu0 0
        %1022 = vmatpush1.bf16.msra.mxu0 %v1006
        %1023 = vmatprep.subr.bf16.mxu0 0
        %1024 = vmatpush1.bf16.msra.mxu0 %v1005
        %1025 = vmatprep.subr.bf16.mxu0 0
        %1026 = vmatpush1.bf16.msra.mxu0 %v1004
        %1027 = vmatprep.subr.bf16.mxu0 0
        %1028 = vmatpush1.bf16.msra.mxu0 %v1003
        %1029 = vmatprep.subr.bf16.mxu0 0
        %1030 = vmatpush1.bf16.msra.mxu0 %v1002
        %1031 = vmatprep.subr.bf16.mxu0 0
        %1032 = vmatpush1.bf16.msra.mxu0 %v1001
        %1033 = vmatprep.subr.bf16.mxu0 0
        %1034 = vmatpush2.bf16.msra.mxu0 0
        %1035 = vmatprep.subr.bf16.mxu0 0
        %1036 = vmatpush2.bf16.msra.mxu0 0
        %1037 = vmatprep.subr.bf16.mxu0 0
        %1038 = vmatpush2.bf16.msra.mxu0 0
        %1039 = vmatprep.subr.bf16.mxu0 0
        %1040 = vmatpush2.bf16.msra.mxu0 0
        %1041 = vmatprep.subr.bf16.mxu0 0
        %1042 = vmatpush2.bf16.msra.mxu0 0
        %1043 = vmatprep.subr.bf16.mxu0 0
        %1044 = vmatpush2.bf16.msra.mxu0 0
        %1045 = vmatprep.subr.bf16.mxu0 0
        %1046 = vmatpush2.bf16.msra.mxu0 0
        %1047 = vmatprep.subr.bf16.mxu0 0
        %1048 = vmatpush2.bf16.msra.mxu0 0
        %1049 = vmatprep.mubr.bf16.mxu0 0
        %1050 = vmatmul.mubr.bf16.gmra.mxu0 %v964
        %v1051 = vpop.f32.mrf.mxu0
        %v1052 = vadd.f32 0.0, %v1051
        %v1053 = vpop.f32.mrf.mxu0
        %v1054 = vpop.f32.mrf.mxu0
        %v1055 = vadd.f32 0.0, %v1054
        %v1056 = vpop.f32.mrf.mxu0
        %1057 = vmatprep.mubr.bf16.mxu0 0
        %1058 = vmatmul.mubr.bf16.gmra.mxu0 %v966
        %v1059 = vpop.f32.mrf.mxu0
        %v1060 = vadd.f32 0.0, %v1059
        %v1061 = vpop.f32.mrf.mxu0
        %v1062 = vpop.f32.mrf.mxu0
        %v1063 = vadd.f32 0.0, %v1062
        %v1064 = vpop.f32.mrf.mxu0
        %1065 = vdwg.mxu0
        %v1066 = vadd.f32 %v940, %v1052
        %v1067 = vadd.f32 %v941, %v1055
        %v1068 = vadd.f32 %v942, %v1060
        %v1069 = vadd.f32 %v943, %v1063
        %v1070 = vld [vmem:[%s4] sm:$0x1]
        %v1072 = vlaneseq
        %v1073 = vshrl.u32 %v1072, 7
        %v1074 = vsub.s32 0, %v1073
        %v1075 = vrot.slane %v1070, %v1074
        %v1077 = vadd.f32 %v1066, %v1075
        %v1078 = vadd.f32 %v1067, %v1075
        %v1079 = vadd.f32 %v1068, %v1075
        %v1080 = vadd.f32 %v1069, %v1075
        %v1081 = vmax.f32 %v1077, 0.0
        %v1082 = vmax.f32 %v1078, 0.0
        %v1083 = vmax.f32 %v1079, 0.0
        %v1084 = vmax.f32 %v1080, 0.0
        %1085 = vst [vmem:[%s378] sm:$0xff] %v1081
        %1086 = vst [vmem:[%s378 + $0x8] sm:$0xff] %v1082
        %1087 = vst [vmem:[%s378 + $0x10] sm:$0xff] %v1083
        %1088 = vst [vmem:[%s378 + $0x18] sm:$0xff] %v1084
        %s1089 = sand.u32 %s190, 1
        %s1090 = scalar_lea.sflag [#allocation4], %s1089
        %s1091 = sand.u32 %s190, 1
        %s1092 = smul.addr %s1091, 32
        %s1093 = scalar_lea.vmem [#allocation10], %s1092
        // Predicated region
        $region57: #{tpu_custom_call.1} parent=39 // pred_check
          %p1094 = pneg %p200
        $region58: #{tpu_custom_call.1} parent=39 // pred_check_branch
          %1096 = sbr.rel (%p1094) target = $region60
        $region59: #{tpu_custom_call.1} parent=39 // pred_region
          %s1097 = smul.u32 4, %s31
          %s1099 = ssub.s32 512, 512
          %1100 = vsyncadd %s1090, %s1099
          %s1101 = smul.addr %s30, 12
          %s1102 = sadd.s32 %s1097, %s1101
          %s1103 = smul.addr %s1102, 128
          %s1104 = scalar_lea.hbm %s5, %s1103
          %s1105 = sshll.u32 %s1093, 4
          %s1106 = int_to_ptr.vmem [resolvable:$true] %s1105
          %1111 = dma.vmem_to_hbm [thread:$0]  %s1106, 512, %s1104, %s1090, 128, 128, 8
        $region60: #{tpu_custom_call.1} parent=39 // pred_fallthru
          _
      $region40: #{tpu_custom_call.1} parent=5 // pred_fallthru
        _
      %p1112 = scmp.le.s32.totalorder 2, %s21
      // Predicated region
      $region61: #{tpu_custom_call.1} parent=5 // pred_check
        %p1113 = pneg %p1112
      $region62: #{tpu_custom_call.1} parent=5 // pred_check_branch
        %1115 = sbr.rel (%p1113) target = $region64
      $region63: #{tpu_custom_call.1} parent=5 // pred_region
        %s1116 = ssub.s32 %s21, 2
        // Predicated region
        $region65: #{tpu_custom_call.1} parent=63 // pred_check
          %p1117 = pneg %p206
        $region66: #{tpu_custom_call.1} parent=63 // pred_check_branch
          %1119 = sbr.rel (%p1117) target = $region68
        $region67: #{tpu_custom_call.1} parent=63 // pred_region
          %s1120 = sand.u32 %s191, 1
          %s1121 = scalar_lea.sflag [#allocation4], %s1120
          %s1122 = sand.u32 %s191, 1
          %s1123 = smul.addr %s1122, 32
          %s1124 = scalar_lea.vmem [#allocation10], %s1123
          %1125 = dma.done %s1121, 512
        $region68: #{tpu_custom_call.1} parent=63 // pred_fallthru
          _
      $region64: #{tpu_custom_call.1} parent=5 // pred_fallthru
        _
    $region6: #{tpu_custom_call.1} parent=1 // loop_footer
      %s25 = sadd.s32 1, %s21
    $region7: #{tpu_custom_call.1} parent=1 // loop_footer_branch
      %20 = sbr.rel target = $region3
    $region8: #{tpu_custom_call.1} parent=1 // loop_exit
      _
    %1126 = vsyncpa [#allocation3], 1
    %s1127 = scalar_lea.sflag [#allocation3], 1
    %1128 = vsyncpa %s1127, 1
    %1129 = vsyncpa [#allocation6], 1
    %s1130 = scalar_lea.sflag [#allocation6], 1
    %1131 = vsyncpa %s1130, 1
    %1132 = vsyncpa [#allocation9], 1
    %1133 = vsyncpa [#allocation4], 1
    %s1134 = scalar_lea.sflag [#allocation4], 1
    %1135 = vsyncpa %s1134, 1

</llo_original>
